<compile_context>
chip_gen: v7x
topology: tpu7x:2x2x1
jax: 0.10.0
libtpu: 0.0.40
codegen_flags: <defaults>
</compile_context>

<pallas_src>
import functools

import jax
import jax.numpy as jnp
import numpy as np
from jax.experimental import pallas as pl
from jax.experimental.pallas import tpu as pltpu

LANE = 128   # lane width
SUB = 8      # f32 sublane quantum
SUB_IN = 16  # bf16 sublane quantum (packed rows)


def _round_up(x, m):
    return (x + m - 1) // m * m


# ----------------------------- Pallas kernel ------------------------------ #
def critic_kernel(s_ref, a_ref, w_ref, out_ref, *, Kp, Hp):
    # conforms: lane-dense (TB, N*F); upcast bf16 -> f32 (v5e VPU has no bf16).
    x = s_ref[...].astype(jnp.float32) + a_ref[...].astype(jnp.float32)

    # Packed, sublane-aligned weight slab (static slices -> zero-cost views).
    w_big = w_ref[0:Kp, :]                   # pool-fold of (GNN proj @ MLP layer 1)  (Kp, Hp)
    w2 = w_ref[Kp:Kp + Hp, :]                # hidden layer 2                         (Hp, Hp)
    vec = w_ref[Kp + Hp:Kp + Hp + SUB, :]    # bias / row pack                        (8, Hp)
    bp = vec[0:1, :]                         # folded bias  bg@w1 + b1                (1, Hp)
    b2 = vec[1:2, :]                         # bias 2                                 (1, Hp)
    wo = vec[2:3, :]                         # final projection (row vector)          (1, Hp)
    bo = vec[3:4, 0:1]                       # final bias                             (1, 1)

    # fused (mean-pool + GNN proj + MLP layer 1) -> ReLU -> layer 2 -> ReLU    (MXU)
    h = jnp.maximum(jnp.dot(x, w_big, preferred_element_type=jnp.float32) + bp, 0.0)
    h = jnp.maximum(jnp.dot(h, w2, preferred_element_type=jnp.float32) + b2, 0.0)

    # (Hp, 1) head kept off the MXU: VPU multiply + lane reduce (XLU)
    out = jnp.sum(h * wo, axis=-1, keepdims=True) + bo                        # (TB, 1)
    out_ref[...] = out.astype(out_ref.dtype)


# ----------------------- host-side parameter folding ----------------------- #
def fold_params(params, N):
    """Fold GNN readout + mean-pool + MLP layer 1 into one padded weight slab.

    Exact algebra:
      mean_n(conforms) @ (wg @ w1) + (bg @ w1 + b1)
        == conforms_flat @ tile(wg @ w1 / N, (N, 1)) + (bg @ w1 + b1)
    Call once per parameter update (hoisted out of the per-call path).
    """
    F = params["wg"].shape[0]
    H = params["w1"].shape[1]
    K = N * F
    Kp = _round_up(K, SUB)
    Hp = _round_up(max(H, LANE), LANE)

    wp = params["wg"] @ params["w1"]                    # (F, H)
    bp = params["bg"] @ params["w1"] + params["b1"]     # (1, H)

    w_big = jnp.zeros((Kp, Hp), jnp.float32).at[:K, :H].set(jnp.tile(wp / N, (N, 1)))
    w2 = jnp.zeros((Hp, Hp), jnp.float32).at[:H, :H].set(params["w2"])
    vec = jnp.zeros((SUB, Hp), jnp.float32)
    vec = vec.at[0, :H].set(bp[0])
    vec = vec.at[1, :H].set(params["b2"][0])
    vec = vec.at[2, :H].set(params["wo"][:, 0])
    vec = vec.at[3, 0].set(params["bo"][0, 0])
    return jnp.concatenate([w_big, w2, vec], axis=0)    # (Kp + Hp + 8, Hp)


# ------------------------------- wrapper ----------------------------------- #
def critic_forward(state, action, slab, *, B, N, tb_max=512):
    """state, action: (B*N, F); slab: fold_params(...). Returns (B, 1) float32."""
    F = state.shape[-1]
    K = N * F
    Hp = slab.shape[1]
    Kp = slab.shape[0] - Hp - SUB

    # Batch tile: full (padded) batch when small, else 512-row tiles (>= ~85% of
    # HBM roofline per measured Pallas data). Per-step VMEM:
    #   2 inputs x 2 pipeline buffers x TB*Kp*2B  +  slab  +  (TB,1) out
    # stays well under the 32 MiB default scoped VMEM (and v7x's 64 MiB physical);
    # raise via pltpu.CompilerParams(vmem_limit_bytes=...) only if TB is enlarged.
    TB = min(tb_max, _round_up(B, SUB_IN))
    B_pad = _round_up(B, TB)

    def prep(x):  # lane-dense (B, N*F) view, bf16 for HBM traffic, pad to tiles
        x = x.reshape(B, K).astype(jnp.bfloat16)
        if B_pad > B or Kp > K:
            x = jnp.pad(x, ((0, B_pad - B), (0, Kp - K)))
        return x

    s2, a2 = prep(state), prep(action)

    flops = 2 * B_pad * Kp * Hp + 2 * B_pad * Hp * Hp + 3 * B_pad * Hp
    bytes_accessed = 2 * (2 * B_pad * Kp) + 4 * slab.size + 4 * B_pad

    out = pl.pallas_call(
        functools.partial(critic_kernel, Kp=Kp, Hp=Hp),
        out_shape=jax.ShapeDtypeStruct((B_pad, 1), jnp.float32),
        grid=(B_pad // TB,),
        in_specs=[
            pl.BlockSpec((TB, Kp), lambda i: (i, 0)),
            pl.BlockSpec((TB, Kp), lambda i: (i, 0)),
            # constant index_map -> slab DMA'd once, VMEM-resident across steps
            pl.BlockSpec(slab.shape, lambda i: (0, 0)),
        ],
        out_specs=pl.BlockSpec((TB, 1), lambda i: (i, 0)),
        compiler_params=pltpu.CompilerParams(
            dimension_semantics=("parallel",)),  # shards batch tiles across v7x's 2 TCs
        cost_estimate=pl.CostEstimate(flops=flops, transcendentals=0,
                                      bytes_accessed=bytes_accessed),
    )(s2, a2, slab)
    return out[:B]


# --------------------------- deterministic init ----------------------------- #
def xavier_uniform(key, shape):
    fan_in, fan_out = shape[0], shape[1]
    bound = float(np.sqrt(6.0 / (fan_in + fan_out)))
    return jax.random.uniform(key, shape, jnp.float32, -bound, bound)


def make_params(key, feat, latent, hidden):
    ks = jax.random.split(key, 4)
    return {
        # GNN readout projection (surrogate)
        "wg": xavier_uniform(ks[0], (feat, latent)),
        "bg": jnp.zeros((1, latent), jnp.float32),
        # MLP head: latent -> hidden -> hidden -> 1  (mlp_layers = 2)
        "w1": xavier_uniform(ks[1], (latent, hidden)),
        "b1": jnp.zeros((1, hidden), jnp.float32),
        "w2": xavier_uniform(ks[2], (hidden, hidden)),
        "b2": jnp.zeros((1, hidden), jnp.float32),
        "wo": xavier_uniform(ks[3], (hidden, 1)),
        "bo": jnp.zeros((1, 1), jnp.float32),
    }


# ------------------------------ reference ----------------------------------- #
def critic_reference(state, action, p, *, B, N):
    conforms = state + action                         # (B*N, F)
    proj = conforms @ p["wg"] + p["bg"]               # (B*N, L)
    g = proj.reshape(B, N, -1).mean(axis=1)           # (B, L)  mean-pool readout
    h = jnp.maximum(g @ p["w1"] + p["b1"], 0.0)
    h = jnp.maximum(h @ p["w2"] + p["b2"], 0.0)
    return h @ p["wo"] + p["bo"]


if __name__ == "__main__":
    B, N, F = 2, 8, 16          # batch, nodes per graph, node feature dim
    LATENT, HIDDEN = 32, 32     # latent_size, mlp_hidden_size (mlp_layers=2)

    key = jax.random.PRNGKey(0)
    k_s, k_a, k_p = jax.random.split(key, 3)

    state = jax.random.normal(k_s, (B * N, F), jnp.float32)
    action = jax.random.normal(k_a, (B * N, F), jnp.float32)
    params = make_params(k_p, F, LATENT, HIDDEN)

    # Folding happens once per parameter update, outside the per-call path.
    slab = fold_params(params, N)

    fwd = jax.jit(functools.partial(critic_forward, B=B, N=N))
    out = fwd(state, action, slab)
    jax.block_until_ready(out)

    ref = critic_reference(state, action, params, B=B, N=N)
    # Inputs travel in bf16 (compute in f32): relaxed tolerance vs. all-f32 ref.
    np.testing.assert_allclose(np.asarray(out), np.asarray(ref),
                               rtol=2e-2, atol=2e-2)
    print("KERNEL_OK")
</pallas_src>

<mosaic_0001>
module attributes {stable_mosaic.version = 11 : i64} {
  func.func @critic_kernel(%arg0: i32, %arg1: memref<16x128xbf16, #tpu.memory_space<vmem>>, %arg2: memref<16x128xbf16, #tpu.memory_space<vmem>>, %arg3: memref<264x128xf32, #tpu.memory_space<vmem>>, %arg4: memref<16x1xf32, #tpu.memory_space<vmem>>) attributes {dimension_semantics = [#tpu.dimension_semantics<parallel>], iteration_bounds = array<i64: 1>, scalar_prefetch = 0 : i64, scratch_operands = 0 : i64, tpu.core_type = #tpu.core_type<tc>, window_params = [{transform_indices = @transform_0, window_bounds = array<i64: 16, 128>}, {transform_indices = @transform_1, window_bounds = array<i64: 16, 128>}, {pipeline_mode = #tpu.pipeline_mode<synchronous>, transform_indices = @transform_2, window_bounds = array<i64: 264, 128>}, {transform_indices = @transform_3, window_bounds = array<i64: 16, 1>}]} {
    %c0 = arith.constant 0 : index
    %c0_0 = arith.constant 0 : index
    %0 = vector.load %arg1[%c0, %c0_0] : memref<16x128xbf16, #tpu.memory_space<vmem>>, vector<16x128xbf16>
    %1 = arith.extf %0 : vector<16x128xbf16> to vector<16x128xf32>
    %c0_1 = arith.constant 0 : index
    %c0_2 = arith.constant 0 : index
    %2 = vector.load %arg2[%c0_1, %c0_2] : memref<16x128xbf16, #tpu.memory_space<vmem>>, vector<16x128xbf16>
    %3 = arith.extf %2 : vector<16x128xbf16> to vector<16x128xf32>
    %4 = arith.addf %1, %3 : vector<16x128xf32>
    %c0_3 = arith.constant 0 : index
    %c0_4 = arith.constant 0 : index
    %5 = vector.load %arg3[%c0_3, %c0_4] : memref<264x128xf32, #tpu.memory_space<vmem>>, vector<128x128xf32>
    %c128 = arith.constant 128 : index
    %c0_5 = arith.constant 0 : index
    %6 = vector.load %arg3[%c128, %c0_5] : memref<264x128xf32, #tpu.memory_space<vmem>>, vector<128x128xf32>
    %c256 = arith.constant 256 : index
    %c0_6 = arith.constant 0 : index
    %7 = vector.load %arg3[%c256, %c0_6] : memref<264x128xf32, #tpu.memory_space<vmem>>, vector<8x128xf32>
    %8 = vector.extract_strided_slice %7 {offsets = [0, 0], sizes = [1, 128], strides = [1, 1]} : vector<8x128xf32> to vector<1x128xf32>
    %9 = vector.extract_strided_slice %7 {offsets = [1, 0], sizes = [1, 128], strides = [1, 1]} : vector<8x128xf32> to vector<1x128xf32>
    %10 = vector.extract_strided_slice %7 {offsets = [2, 0], sizes = [1, 128], strides = [1, 1]} : vector<8x128xf32> to vector<1x128xf32>
    %11 = vector.extract_strided_slice %7 {offsets = [3, 0], sizes = [1, 1], strides = [1, 1]} : vector<8x128xf32> to vector<1x1xf32>
    %cst = arith.constant dense<0.000000e+00> : vector<16x128xf32>
    %12 = tpu.matmul %4, %5, %cst {dimension_numbers = #tpu.dot_dimension_numbers<[1], [0], [0], [1], [0, 0, 1, 1], [], []>} : vector<16x128xf32>, vector<128x128xf32>, vector<16x128xf32> -> vector<16x128xf32>
    %13 = vector.broadcast %8 : vector<1x128xf32> to vector<16x128xf32>
    %14 = arith.addf %12, %13 : vector<16x128xf32>
    %cst_7 = arith.constant 0.000000e+00 : f32
    %15 = vector.broadcast %cst_7 : f32 to vector<16x128xf32>
    %16 = arith.maximumf %14, %15 : vector<16x128xf32>
    %cst_8 = arith.constant dense<0.000000e+00> : vector<16x128xf32>
    %17 = tpu.matmul %16, %6, %cst_8 {dimension_numbers = #tpu.dot_dimension_numbers<[1], [0], [0], [1], [0, 0, 1, 1], [], []>} : vector<16x128xf32>, vector<128x128xf32>, vector<16x128xf32> -> vector<16x128xf32>
    %18 = vector.broadcast %9 : vector<1x128xf32> to vector<16x128xf32>
    %19 = arith.addf %17, %18 : vector<16x128xf32>
    %cst_9 = arith.constant 0.000000e+00 : f32
    %20 = vector.broadcast %cst_9 : f32 to vector<16x128xf32>
    %21 = arith.maximumf %19, %20 : vector<16x128xf32>
    %22 = vector.broadcast %10 : vector<1x128xf32> to vector<16x128xf32>
    %23 = arith.mulf %21, %22 : vector<16x128xf32>
    %cst_10 = arith.constant dense<0.000000e+00> : vector<16xf32>
    %24 = vector.multi_reduction <add>, %23, %cst_10 [1] : vector<16x128xf32> to vector<16xf32>
    %25 = vector.shape_cast %24 : vector<16xf32> to vector<16x1xf32>
    %26 = vector.broadcast %11 : vector<1x1xf32> to vector<16x1xf32>
    %27 = arith.addf %25, %26 : vector<16x1xf32>
    %c0_11 = arith.constant 0 : index
    %c0_12 = arith.constant 0 : index
    %28 = vector.load %arg4[%c0_11, %c0_12] : memref<16x1xf32, #tpu.memory_space<vmem>>, vector<16x1xf32>
    tpu.vector_store %arg4[%c0_11, %c0_12], %27 {strides = array<i32>} : memref<16x1xf32, #tpu.memory_space<vmem>>, vector<16x1xf32>,
    return
  }
  func.func @transform_0(%arg0: i32) -> (i32, i32) {
    %c0_i32 = arith.constant 0 : i32
    %c0_i32_0 = arith.constant 0 : i32
    return %arg0, %c0_i32 : i32, i32
  }
  func.func @transform_1(%arg0: i32) -> (i32, i32) {
    %c0_i32 = arith.constant 0 : i32
    %c0_i32_0 = arith.constant 0 : i32
    return %arg0, %c0_i32 : i32, i32
  }
  func.func @transform_2(%arg0: i32) -> (i32, i32) {
    %c0_i32 = arith.constant 0 : i32
    %c0_i32_0 = arith.constant 0 : i32
    %c0_i32_1 = arith.constant 0 : i32
    return %c0_i32, %c0_i32_0 : i32, i32
  }
  func.func @transform_3(%arg0: i32) -> (i32, i32) {
    %c0_i32 = arith.constant 0 : i32
    %c0_i32_0 = arith.constant 0 : i32
    return %arg0, %c0_i32 : i32, i32
  }
}

</mosaic_0001>

<llo_original>
// kernel: critic_forward.1
$region0: #{critic_forward.1}
  #allocation0 [shape = 'u32[]', space=smem, size = 0x4, offset = 0x4, fixed_abs, tag = 'smem constant byte address 0x4 - core index']
  #allocation1 [shape = 'u32[144,128]{1,0:T(1,128)}', space=vmem, size = 0x12000, scoped, tag = 'internal scratch']
  %s0 = inlined_call_operand.vmem [shape: bf16[16,128], index: 0, kind: input, shape index: {}]
  %s1 = inlined_call_operand.vmem [shape: bf16[16,128], index: 1, kind: input, shape index: {}]
  %s2 = inlined_call_operand.hbm [shape: f32[264,128], index: 2, kind: input, shape index: {}]
  %s3 = inlined_call_operand.vmem [shape: f32[16,1], index: 3, kind: output, shape index: {}]
  %s4 = sld [smem:[#allocation0]]
  $region26: #{critic_forward.1} parent=0
    _
  %s6 = ssub.s32 1, %s4
  %s7 = scalar_select 0, %s6, %s4
  $region1: #{critic_forward.1} parent=0
    #allocation2 [shape = 'u8[135168]{0}', space=vmem, size = 0x21000, scoped, tag = 'input window, operand 2, single buffered']
    #allocation3 [shape = 's32[1]{0}', space=sflag, size = 0x4, scoped, tag = 'scoped memory for critic_forward.1']
    %8 = vsyncpa [#allocation3], 0
    // Predicated region
    $region2: #{critic_forward.1} parent=1 // pred_check
      _
    $region3: #{critic_forward.1} parent=1 // pred_check_branch
      %10 = sbr.rel (0) target = $region5
    $region4: #{critic_forward.1} parent=1 // pred_region
      _
    $region5: #{critic_forward.1} parent=1 // pred_fallthru
      _
    // Predicated region
    $region6: #{critic_forward.1} parent=1 // pred_check
      _
    $region7: #{critic_forward.1} parent=1 // pred_check_branch
      %12 = sbr.rel (0) target = $region9
    $region8: #{critic_forward.1} parent=1 // pred_region
      _
    $region9: #{critic_forward.1} parent=1 // pred_fallthru
      _
    // Predicated region
    $region10: #{critic_forward.1} parent=1 // pred_check
      _
    $region11: #{critic_forward.1} parent=1 // pred_check_branch
      %14 = sbr.rel (0) target = $region13
    $region12: #{critic_forward.1} parent=1 // pred_region
      %s16 = ssub.s32 4224, 4224
      %17 = vsyncadd [#allocation3], %s16
      %s18 = sshll.u32 [#allocation2], 4
      %s19 = int_to_ptr.vmem [resolvable:$true] %s18
      %24 = dma.hbm_to_vmem [thread:$0]  %s2, 4224, %s19, [#allocation3], 128, 128, 8
    $region13: #{critic_forward.1} parent=1 // pred_fallthru
      _
    // Predicated region
    $region14: #{critic_forward.1} parent=1 // pred_check
      _
    $region15: #{critic_forward.1} parent=1 // pred_check_branch
      %26 = sbr.rel (0) target = $region17
    $region16: #{critic_forward.1} parent=1 // pred_region
      %27 = dma.done [#allocation3], 4224
    $region17: #{critic_forward.1} parent=1 // pred_fallthru
      _
    %v28 = vld [vmem:[%s0] sm:$0xf]
    %v29 = vld [vmem:[%s0 + $0x4] sm:$0xf]
    %v30 = vunpack.c.l.bf16 %v28
    %v31 = vunpack.c.l.bf16 %v29
    %v32 = vld [vmem:[%s1] sm:$0xf]
    %v33 = vld [vmem:[%s1 + $0x4] sm:$0xf]
    %v34 = vunpack.c.l.bf16 %v32
    %v35 = vunpack.c.l.bf16 %v33
    %v36 = vadd.f32 %v30, %v34
    %v37 = vadd.f32 %v31, %v35
    %v38 = vld [vmem:[#allocation2] sm:$0xff]
    %v39 = vld [vmem:[#allocation2 + $0x8] sm:$0xff]
    %v40 = vld [vmem:[#allocation2 + $0x10] sm:$0xff]
    %v41 = vld [vmem:[#allocation2 + $0x18] sm:$0xff]
    %v42 = vld [vmem:[#allocation2 + $0x20] sm:$0xff]
    %v43 = vld [vmem:[#allocation2 + $0x28] sm:$0xff]
    %v44 = vld [vmem:[#allocation2 + $0x30] sm:$0xff]
    %v45 = vld [vmem:[#allocation2 + $0x38] sm:$0xff]
    %v46 = vld [vmem:[#allocation2 + $0x40] sm:$0xff]
    %v47 = vld [vmem:[#allocation2 + $0x48] sm:$0xff]
    %v48 = vld [vmem:[#allocation2 + $0x50] sm:$0xff]
    %v49 = vld [vmem:[#allocation2 + $0x58] sm:$0xff]
    %v50 = vld [vmem:[#allocation2 + $0x60] sm:$0xff]
    %v51 = vld [vmem:[#allocation2 + $0x68] sm:$0xff]
    %v52 = vld [vmem:[#allocation2 + $0x70] sm:$0xff]
    %v53 = vld [vmem:[#allocation2 + $0x78] sm:$0xff]
    %v54 = vld [vmem:[#allocation2 + $0x80] sm:$0xff]
    %v55 = vld [vmem:[#allocation2 + $0x88] sm:$0xff]
    %v56 = vld [vmem:[#allocation2 + $0x90] sm:$0xff]
    %v57 = vld [vmem:[#allocation2 + $0x98] sm:$0xff]
    %v58 = vld [vmem:[#allocation2 + $0xa0] sm:$0xff]
    %v59 = vld [vmem:[#allocation2 + $0xa8] sm:$0xff]
    %v60 = vld [vmem:[#allocation2 + $0xb0] sm:$0xff]
    %v61 = vld [vmem:[#allocation2 + $0xb8] sm:$0xff]
    %v62 = vld [vmem:[#allocation2 + $0xc0] sm:$0xff]
    %v63 = vld [vmem:[#allocation2 + $0xc8] sm:$0xff]
    %v64 = vld [vmem:[#allocation2 + $0xd0] sm:$0xff]
    %v65 = vld [vmem:[#allocation2 + $0xd8] sm:$0xff]
    %v66 = vld [vmem:[#allocation2 + $0xe0] sm:$0xff]
    %v67 = vld [vmem:[#allocation2 + $0xe8] sm:$0xff]
    %v68 = vld [vmem:[#allocation2 + $0xf0] sm:$0xff]
    %v69 = vld [vmem:[#allocation2 + $0xf8] sm:$0xff]
    %v70 = vld [vmem:[#allocation2 + $0x100] sm:$0xff]
    %v71 = vlaneseq
    %v72 = vshrl.u32 %v71, 7
    %v73 = vsub.s32 0, %v72
    %v74 = vrot.slane %v70, %v73
    %75 = vmatprep.subr.mxu0 0.0
    %76 = vmatpush1.msra.mxu0 %v38
    %77 = vmatprep.subr.mxu0 0.0
    %78 = vmatpush1.msra.mxu0 %v39
    %79 = vmatprep.subr.mxu0 0.0
    %80 = vmatpush1.msra.mxu0 %v40
    %81 = vmatprep.subr.mxu0 0.0
    %82 = vmatpush1.msra.mxu0 %v41
    %83 = vmatprep.subr.mxu0 0.0
    %84 = vmatpush1.msra.mxu0 %v42
    %85 = vmatprep.subr.mxu0 0.0
    %86 = vmatpush1.msra.mxu0 %v43
    %87 = vmatprep.subr.mxu0 0.0
    %88 = vmatpush1.msra.mxu0 %v44
    %89 = vmatprep.subr.mxu0 0.0
    %90 = vmatpush1.msra.mxu0 %v45
    %91 = vmatprep.subr.mxu0 0.0
    %92 = vmatpush1.msra.mxu0 %v46
    %93 = vmatprep.subr.mxu0 0.0
    %94 = vmatpush1.msra.mxu0 %v47
    %95 = vmatprep.subr.mxu0 0.0
    %96 = vmatpush1.msra.mxu0 %v48
    %97 = vmatprep.subr.mxu0 0.0
    %98 = vmatpush1.msra.mxu0 %v49
    %99 = vmatprep.subr.mxu0 0.0
    %100 = vmatpush1.msra.mxu0 %v50
    %101 = vmatprep.subr.mxu0 0.0
    %102 = vmatpush1.msra.mxu0 %v51
    %103 = vmatprep.subr.mxu0 0.0
    %104 = vmatpush1.msra.mxu0 %v52
    %105 = vmatprep.subr.mxu0 0.0
    %106 = vmatpush1.msra.mxu0 %v53
    %107 = vmatprep.subr.mxu0 0.0
    %108 = vmatpush1.msra.mxu0 0.0
    %109 = vmatprep.subr.mxu0 0.0
    %110 = vmatpush1.msra.mxu0 0.0
    %111 = vmatprep.subr.mxu0 0.0
    %112 = vmatpush1.msra.mxu0 0.0
    %113 = vmatprep.subr.mxu0 0.0
    %114 = vmatpush1.msra.mxu0 0.0
    %115 = vmatprep.subr.mxu0 0.0
    %116 = vmatpush1.msra.mxu0 0.0
    %117 = vmatprep.subr.mxu0 0.0
    %118 = vmatpush1.msra.mxu0 0.0
    %119 = vmatprep.subr.mxu0 0.0
    %120 = vmatpush1.msra.mxu0 0.0
    %121 = vmatprep.subr.mxu0 0.0
    %122 = vmatpush1.msra.mxu0 0.0
    %123 = vmatprep.subr.mxu0 0.0
    %124 = vmatpush1.msra.mxu0 0.0
    %125 = vmatprep.subr.mxu0 0.0
    %126 = vmatpush1.msra.mxu0 0.0
    %127 = vmatprep.subr.mxu0 0.0
    %128 = vmatpush1.msra.mxu0 0.0
    %129 = vmatprep.subr.mxu0 0.0
    %130 = vmatpush1.msra.mxu0 0.0
    %131 = vmatprep.subr.mxu0 0.0
    %132 = vmatpush1.msra.mxu0 0.0
    %133 = vmatprep.subr.mxu0 0.0
    %134 = vmatpush1.msra.mxu0 0.0
    %135 = vmatprep.subr.mxu0 0.0
    %136 = vmatpush1.msra.mxu0 0.0
    %137 = vmatprep.subr.mxu0 0.0
    %138 = vmatpush1.msra.mxu0 0.0
    %139 = vmatprep.mubr.f32.mxu0 0.0
    %140 = vmatmul.mubr.f32.gmra.mrb[0].mxu0 %v36
    %v141 = vpop.f32.mrb[0].mxu0
    %v142 = vadd.f32 %v74, %v141
    %v143 = vpop.f32.mrb[0].mxu0
    %144 = vmatprep.mubr.f32.mxu0 0.0
    %145 = vmatmul.mubr.f32.gmra.mrb[0].mxu0 %v37
    %v146 = vpop.f32.mrb[0].mxu0
    %v147 = vadd.f32 %v74, %v146
    %v148 = vpop.f32.mrb[0].mxu0
    %149 = vdwg.mxu0
    %v150 = vmax.f32 %v142, 0.0
    %v151 = vmax.f32 %v147, 0.0
    %v152 = vlaneseq
    %v153 = vshrl.u32 %v152, 7
    %v154 = vsub.s32 1, %v153
    %v155 = vrot.slane %v70, %v154
    %156 = vmatprep.subr.mxu0 0.0
    %157 = vmatpush1.msra.mxu0 %v54
    %158 = vmatprep.subr.mxu0 0.0
    %159 = vmatpush1.msra.mxu0 %v55
    %160 = vmatprep.subr.mxu0 0.0
    %161 = vmatpush1.msra.mxu0 %v56
    %162 = vmatprep.subr.mxu0 0.0
    %163 = vmatpush1.msra.mxu0 %v57
    %164 = vmatprep.subr.mxu0 0.0
    %165 = vmatpush1.msra.mxu0 %v58
    %166 = vmatprep.subr.mxu0 0.0
    %167 = vmatpush1.msra.mxu0 %v59
    %168 = vmatprep.subr.mxu0 0.0
    %169 = vmatpush1.msra.mxu0 %v60
    %170 = vmatprep.subr.mxu0 0.0
    %171 = vmatpush1.msra.mxu0 %v61
    %172 = vmatprep.subr.mxu0 0.0
    %173 = vmatpush1.msra.mxu0 %v62
    %174 = vmatprep.subr.mxu0 0.0
    %175 = vmatpush1.msra.mxu0 %v63
    %176 = vmatprep.subr.mxu0 0.0
    %177 = vmatpush1.msra.mxu0 %v64
    %178 = vmatprep.subr.mxu0 0.0
    %179 = vmatpush1.msra.mxu0 %v65
    %180 = vmatprep.subr.mxu0 0.0
    %181 = vmatpush1.msra.mxu0 %v66
    %182 = vmatprep.subr.mxu0 0.0
    %183 = vmatpush1.msra.mxu0 %v67
    %184 = vmatprep.subr.mxu0 0.0
    %185 = vmatpush1.msra.mxu0 %v68
    %186 = vmatprep.subr.mxu0 0.0
    %187 = vmatpush1.msra.mxu0 %v69
    %188 = vmatprep.subr.mxu0 0.0
    %189 = vmatpush1.msra.mxu0 0.0
    %190 = vmatprep.subr.mxu0 0.0
    %191 = vmatpush1.msra.mxu0 0.0
    %192 = vmatprep.subr.mxu0 0.0
    %193 = vmatpush1.msra.mxu0 0.0
    %194 = vmatprep.subr.mxu0 0.0
    %195 = vmatpush1.msra.mxu0 0.0
    %196 = vmatprep.subr.mxu0 0.0
    %197 = vmatpush1.msra.mxu0 0.0
    %198 = vmatprep.subr.mxu0 0.0
    %199 = vmatpush1.msra.mxu0 0.0
    %200 = vmatprep.subr.mxu0 0.0
    %201 = vmatpush1.msra.mxu0 0.0
    %202 = vmatprep.subr.mxu0 0.0
    %203 = vmatpush1.msra.mxu0 0.0
    %204 = vmatprep.subr.mxu0 0.0
    %205 = vmatpush1.msra.mxu0 0.0
    %206 = vmatprep.subr.mxu0 0.0
    %207 = vmatpush1.msra.mxu0 0.0
    %208 = vmatprep.subr.mxu0 0.0
    %209 = vmatpush1.msra.mxu0 0.0
    %210 = vmatprep.subr.mxu0 0.0
    %211 = vmatpush1.msra.mxu0 0.0
    %212 = vmatprep.subr.mxu0 0.0
    %213 = vmatpush1.msra.mxu0 0.0
    %214 = vmatprep.subr.mxu0 0.0
    %215 = vmatpush1.msra.mxu0 0.0
    %216 = vmatprep.subr.mxu0 0.0
    %217 = vmatpush1.msra.mxu0 0.0
    %218 = vmatprep.subr.mxu0 0.0
    %219 = vmatpush1.msra.mxu0 0.0
    %220 = vmatprep.mubr.f32.mxu0 0.0
    %221 = vmatmul.mubr.f32.gmra.mrb[0].mxu0 %v150
    %v222 = vpop.f32.mrb[0].mxu0
    %v223 = vadd.f32 %v155, %v222
    %v224 = vpop.f32.mrb[0].mxu0
    %225 = vmatprep.mubr.f32.mxu0 0.0
    %226 = vmatmul.mubr.f32.gmra.mrb[0].mxu0 %v151
    %v227 = vpop.f32.mrb[0].mxu0
    %v228 = vadd.f32 %v155, %v227
    %v229 = vpop.f32.mrb[0].mxu0
    %230 = vdwg.mxu0
    %v231 = vmax.f32 %v223, 0.0
    %v232 = vmax.f32 %v228, 0.0
    %v233 = vlaneseq
    %v234 = vshrl.u32 %v233, 7
    %v235 = vsub.s32 2, %v234
    %v236 = vrot.slane %v70, %v235
    %v237 = vmul.f32 %v231, %v236
    %v238 = vmul.f32 %v232, %v236
    %239 = vadd.xlane.f32.xlu0 %v237
    %v240 = vpop.xlane.xlu0 %239
    %241 = vadd.xlane.f32.xlu0 %v238
    %v242 = vpop.xlane.xlu0 %241
    %v243 = vlaneseq
    %v244 = vshrl.u32 %v243, 7
    %v245 = vsub.s32 3, %v244
    %v246 = vrot.slane %v70, %v245
    %v247 = vadd.f32 %v240, %v246
    %v248 = vadd.f32 %v242, %v246
    %vm249 = vcmask 7168
    %250 = vst.msk [vmem:[%s3] sm:$0xff] %vm249, %v247
    %251 = vst.msk [vmem:[%s3 + $0x8] sm:$0xff] %vm249, %v248
    // Predicated region
    $region18: #{critic_forward.1} parent=1 // pred_check
      _
    $region19: #{critic_forward.1} parent=1 // pred_check_branch
      %253 = sbr.rel (0) target = $region21
    $region20: #{critic_forward.1} parent=1 // pred_region
      _
    $region21: #{critic_forward.1} parent=1 // pred_fallthru
      _
    // Predicated region
    $region22: #{critic_forward.1} parent=1 // pred_check
      _
    $region23: #{critic_forward.1} parent=1 // pred_check_branch
      %255 = sbr.rel (0) target = $region25
    $region24: #{critic_forward.1} parent=1 // pred_region
      _
    $region25: #{critic_forward.1} parent=1 // pred_fallthru
      _
    %256 = vsyncpa [#allocation3], 1

</llo_original>
